<compile_context>
chip_gen: v5e
topology: v5e:2x2
jax: 0.10.0
libtpu: 0.0.40
codegen_flags: <defaults>
</compile_context>

<pallas_src>
import math
from functools import partial

import jax
import jax.numpy as jnp
from jax.experimental import pallas as pl
from jax.experimental.pallas import tpu as pltpu


def _round_up(x, m):
    return ((x + m - 1) // m) * m


def transhead_kernel(x_ref, w1_ref, b1_ref, w2_ref, b2_ref, o_ref):
    # x : [TM, K_PAD] bf16, w1 : [K_PAD, HID] bf16, b1 : [1, HID] f32,
    # w2 : [HID, OUT_PAD] bf16, b2 : [1, OUT_PAD] f32, o : [TM, OUT_PAD] f32
    h = jnp.dot(x_ref[...], w1_ref[...], preferred_element_type=jnp.float32)
    h = jnp.maximum(h + b1_ref[...], 0.0)  # bias + ReLU in f32 (VPU)
    out = jnp.dot(h.astype(jnp.bfloat16), w2_ref[...],
                  preferred_element_type=jnp.float32)
    o_ref[...] = (out + b2_ref[...]).astype(o_ref.dtype)


@partial(jax.jit, static_argnames=("tm",))
def transhead_forward(x, w1, b1, w2, b2, *, tm=128):
    """x: [B, IN] f32, w1: [IN, HID], b1: [1, HID], w2: [HID, OUT], b2: [1, OUT]."""
    B, in_f = x.shape
    hid = w1.shape[1]
    out_dim = w2.shape[1]

    # Lane-aligned padded sizes.
    k_pad = _round_up(in_f, 128)           # 515 -> 640
    out_pad = _round_up(out_dim, 128)      # 3   -> 128
    # Adapt the batch tile: multiple of 16 (bf16 sublane packing), <= tm,
    # so small batches don't pad all the way to 128 rows.
    tm_eff = min(tm, _round_up(B, 16))
    b_pad = _round_up(B, tm_eff)

    # Pad + cast inputs / weights (bf16 feeds the MXU, biases stay f32).
    x_p = jnp.pad(x.astype(jnp.bfloat16),
                  ((0, b_pad - B), (0, k_pad - in_f)))
    w1_p = jnp.pad(w1.astype(jnp.bfloat16), ((0, k_pad - in_f), (0, 0)))
    w2_p = jnp.pad(w2.astype(jnp.bfloat16), ((0, 0), (0, out_pad - out_dim)))
    b1_p = b1.reshape(1, hid).astype(jnp.float32)
    b2_p = jnp.pad(b2.reshape(1, out_dim).astype(jnp.float32),
                   ((0, 0), (0, out_pad - out_dim)))

    grid = (b_pad // tm_eff,)
    flops = 2 * B * (in_f * hid + hid * out_dim)
    bytes_accessed = (x_p.size * 2 + w1_p.size * 2 + w2_p.size * 2
                      + b1_p.size * 4 + b2_p.size * 4 + b_pad * out_pad * 4)

    out_padded = pl.pallas_call(
        transhead_kernel,
        out_shape=jax.ShapeDtypeStruct((b_pad, out_pad), jnp.float32),
        grid=grid,
        in_specs=[
            pl.BlockSpec((tm_eff, k_pad), lambda i: (i, 0)),  # x tile, pipelined
            pl.BlockSpec((k_pad, hid), lambda i: (0, 0)),     # w1 resident
            pl.BlockSpec((1, hid), lambda i: (0, 0)),         # b1 resident
            pl.BlockSpec((hid, out_pad), lambda i: (0, 0)),   # w2 resident
            pl.BlockSpec((1, out_pad), lambda i: (0, 0)),     # b2 resident
        ],
        out_specs=pl.BlockSpec((tm_eff, out_pad), lambda i: (i, 0)),
        compiler_params=pltpu.CompilerParams(
            dimension_semantics=("parallel",),
        ),
        cost_estimate=pl.CostEstimate(
            flops=flops, transcendentals=0, bytes_accessed=bytes_accessed),
    )(x_p, w1_p, b1_p, w2_p, b2_p)

    # Strip batch / lane padding; return in the input dtype (f32 here).
    return out_padded[:B, :out_dim].astype(x.dtype)


def init_transhead_params(key, base_neurons=(515, 256), out_dim=3, dtype=jnp.float32):
    """PyTorch nn.Linear default init: U[-1/sqrt(fan_in), 1/sqrt(fan_in)]."""
    if out_dim not in (3, 6):
        raise ValueError(f"Unrecognized transhead out dim: {out_dim}")
    k1, k2, k3, k4 = jax.random.split(key, 4)
    in_f, hid = base_neurons[0], base_neurons[1]

    bound1 = 1.0 / math.sqrt(in_f)
    w1 = jax.random.uniform(k1, (in_f, hid), dtype, minval=-bound1, maxval=bound1)
    b1 = jax.random.uniform(k2, (1, hid), dtype, minval=-bound1, maxval=bound1)

    bound2 = 1.0 / math.sqrt(hid)
    w2 = jax.random.uniform(k3, (hid, out_dim), dtype, minval=-bound2, maxval=bound2)
    b2 = jax.random.uniform(k4, (1, out_dim), dtype, minval=-bound2, maxval=bound2)
    return w1, b1, w2, b2


if __name__ == "__main__":
    key = jax.random.PRNGKey(0)
    k_param, k_inp = jax.random.split(key)

    B, IN_DIM, HID, OUT_DIM = 8, 515, 256, 3
    w1, b1, w2, b2 = init_transhead_params(
        k_param, base_neurons=(IN_DIM, HID), out_dim=OUT_DIM)
    x = jax.random.normal(k_inp, (B, IN_DIM), dtype=jnp.float32)

    out = transhead_forward(x, w1, b1, w2, b2)
    out = jax.block_until_ready(out)
    assert out.shape == (B, OUT_DIM)

    # Reference 1: emulate the kernel's bf16-input / f32-accumulate matmuls.
    xb = x.astype(jnp.bfloat16).astype(jnp.float32)
    w1b = w1.astype(jnp.bfloat16).astype(jnp.float32)
    w2b = w2.astype(jnp.bfloat16).astype(jnp.float32)
    h = jnp.maximum(xb @ w1b + b1, 0.0)
    ref_bf16 = h.astype(jnp.bfloat16).astype(jnp.float32) @ w2b + b2
    assert jnp.allclose(out, ref_bf16, atol=2e-3, rtol=2e-3)

    # Reference 2: loose check against the full-f32 PyTorch-equivalent forward.
    ref_f32 = jnp.maximum(x @ w1 + b1, 0.0) @ w2 + b2
    assert jnp.allclose(out, ref_f32, atol=5e-2, rtol=5e-2)

    print("KERNEL_OK")
</pallas_src>

<mosaic_0001>
module attributes {stable_mosaic.version = 11 : i64} {
  func.func @transhead_kernel(%arg0: i32, %arg1: memref<16x640xbf16, #tpu.memory_space<vmem>>, %arg2: memref<640x256xbf16, #tpu.memory_space<vmem>>, %arg3: memref<1x256xf32, #tpu.memory_space<vmem>>, %arg4: memref<256x128xbf16, #tpu.memory_space<vmem>>, %arg5: memref<1x128xf32, #tpu.memory_space<vmem>>, %arg6: memref<16x128xf32, #tpu.memory_space<vmem>>) attributes {dimension_semantics = [#tpu.dimension_semantics<parallel>], iteration_bounds = array<i64: 1>, scalar_prefetch = 0 : i64, scratch_operands = 0 : i64, tpu.core_type = #tpu.core_type<tc>, window_params = [{transform_indices = @transform_0, window_bounds = array<i64: 16, 640>}, {pipeline_mode = #tpu.pipeline_mode<synchronous>, transform_indices = @transform_1, window_bounds = array<i64: 640, 256>}, {pipeline_mode = #tpu.pipeline_mode<synchronous>, transform_indices = @transform_2, window_bounds = array<i64: 1, 256>}, {pipeline_mode = #tpu.pipeline_mode<synchronous>, transform_indices = @transform_3, window_bounds = array<i64: 256, 128>}, {pipeline_mode = #tpu.pipeline_mode<synchronous>, transform_indices = @transform_4, window_bounds = array<i64: 1, 128>}, {transform_indices = @transform_5, window_bounds = array<i64: 16, 128>}]} {
    %c0 = arith.constant 0 : index
    %c0_0 = arith.constant 0 : index
    %0 = vector.load %arg1[%c0, %c0_0] : memref<16x640xbf16, #tpu.memory_space<vmem>>, vector<16x640xbf16>
    %c0_1 = arith.constant 0 : index
    %c0_2 = arith.constant 0 : index
    %1 = vector.load %arg2[%c0_1, %c0_2] : memref<640x256xbf16, #tpu.memory_space<vmem>>, vector<640x256xbf16>
    %cst = arith.constant dense<0.000000e+00> : vector<16x256xf32>
    %2 = tpu.matmul %0, %1, %cst {dimension_numbers = #tpu.dot_dimension_numbers<[1], [0], [0], [1], [0, 0, 1, 1], [], []>} : vector<16x640xbf16>, vector<640x256xbf16>, vector<16x256xf32> -> vector<16x256xf32>
    %c0_3 = arith.constant 0 : index
    %c0_4 = arith.constant 0 : index
    %3 = vector.load %arg3[%c0_3, %c0_4] : memref<1x256xf32, #tpu.memory_space<vmem>>, vector<1x256xf32>
    %4 = vector.broadcast %3 : vector<1x256xf32> to vector<16x256xf32>
    %5 = arith.addf %2, %4 : vector<16x256xf32>
    %cst_5 = arith.constant 0.000000e+00 : f32
    %6 = vector.broadcast %cst_5 : f32 to vector<16x256xf32>
    %7 = arith.maximumf %5, %6 : vector<16x256xf32>
    %8 = arith.truncf %7 : vector<16x256xf32> to vector<16x256xbf16>
    %c0_6 = arith.constant 0 : index
    %c0_7 = arith.constant 0 : index
    %9 = vector.load %arg4[%c0_6, %c0_7] : memref<256x128xbf16, #tpu.memory_space<vmem>>, vector<256x128xbf16>
    %cst_8 = arith.constant dense<0.000000e+00> : vector<16x128xf32>
    %10 = tpu.matmul %8, %9, %cst_8 {dimension_numbers = #tpu.dot_dimension_numbers<[1], [0], [0], [1], [0, 0, 1, 1], [], []>} : vector<16x256xbf16>, vector<256x128xbf16>, vector<16x128xf32> -> vector<16x128xf32>
    %c0_9 = arith.constant 0 : index
    %c0_10 = arith.constant 0 : index
    %11 = vector.load %arg5[%c0_9, %c0_10] : memref<1x128xf32, #tpu.memory_space<vmem>>, vector<1x128xf32>
    %12 = vector.broadcast %11 : vector<1x128xf32> to vector<16x128xf32>
    %13 = arith.addf %10, %12 : vector<16x128xf32>
    %c0_11 = arith.constant 0 : index
    %c0_12 = arith.constant 0 : index
    %14 = vector.load %arg6[%c0_11, %c0_12] : memref<16x128xf32, #tpu.memory_space<vmem>>, vector<16x128xf32>
    tpu.vector_store %arg6[%c0_11, %c0_12], %13 {strides = array<i32>} : memref<16x128xf32, #tpu.memory_space<vmem>>, vector<16x128xf32>,
    return
  }
  func.func @transform_0(%arg0: i32) -> (i32, i32) {
    %c0_i32 = arith.constant 0 : i32
    %c0_i32_0 = arith.constant 0 : i32
    return %arg0, %c0_i32 : i32, i32
  }
  func.func @transform_1(%arg0: i32) -> (i32, i32) {
    %c0_i32 = arith.constant 0 : i32
    %c0_i32_0 = arith.constant 0 : i32
    %c0_i32_1 = arith.constant 0 : i32
    return %c0_i32, %c0_i32_0 : i32, i32
  }
  func.func @transform_2(%arg0: i32) -> (i32, i32) {
    %c0_i32 = arith.constant 0 : i32
    %c0_i32_0 = arith.constant 0 : i32
    %c0_i32_1 = arith.constant 0 : i32
    return %c0_i32, %c0_i32_0 : i32, i32
  }
  func.func @transform_3(%arg0: i32) -> (i32, i32) {
    %c0_i32 = arith.constant 0 : i32
    %c0_i32_0 = arith.constant 0 : i32
    %c0_i32_1 = arith.constant 0 : i32
    return %c0_i32, %c0_i32_0 : i32, i32
  }
  func.func @transform_4(%arg0: i32) -> (i32, i32) {
    %c0_i32 = arith.constant 0 : i32
    %c0_i32_0 = arith.constant 0 : i32
    %c0_i32_1 = arith.constant 0 : i32
    return %c0_i32, %c0_i32_0 : i32, i32
  }
  func.func @transform_5(%arg0: i32) -> (i32, i32) {
    %c0_i32 = arith.constant 0 : i32
    %c0_i32_0 = arith.constant 0 : i32
    return %arg0, %c0_i32 : i32, i32
  }
}

</mosaic_0001>

<llo_original>
// kernel: transhead_forward.1
$region0: #{transhead_forward.1}
  #allocation0 [shape = 'u32[]', space=smem, size = 0x4, offset = 0x4, fixed_abs, tag = 'smem constant byte address 0x4 - core index']
  #allocation1 [shape = 'u32[72,128]{1,0:T(1,128)}', space=vmem, size = 0x9000, scoped, tag = 'internal scratch']
  %s0 = inlined_call_operand.vmem [shape: bf16[16,640], index: 0, kind: input, shape index: {}]
  %s1 = inlined_call_operand.vmem [shape: bf16[640,256], index: 1, kind: input, shape index: {}]
  %s2 = inlined_call_operand.vmem [shape: f32[1,256], index: 2, kind: input, shape index: {}]
  %s3 = inlined_call_operand.vmem [shape: bf16[256,128], index: 3, kind: input, shape index: {}]
  %s4 = inlined_call_operand.vmem [shape: f32[1,128], index: 4, kind: input, shape index: {}]
  %s5 = inlined_call_operand.vmem [shape: f32[16,128], index: 5, kind: output, shape index: {}]
  %s6 = sld [smem:[#allocation0]]
  $region30: #{transhead_forward.1} parent=0
    _
  %s8 = ssub.s32 1, %s6
  %s9 = scalar_select 0, %s8, %s6
  // Predicated region
  $region2: #{transhead_forward.1} parent=0 // pred_check
    _
  $region3: #{transhead_forward.1} parent=0 // pred_check_branch
    %11 = sbr.rel (0) target = $region5
  $region4: #{transhead_forward.1} parent=0 // pred_region
    _
  $region5: #{transhead_forward.1} parent=0 // pred_fallthru
    _
  // Predicated region
  $region6: #{transhead_forward.1} parent=0 // pred_check
    _
  $region7: #{transhead_forward.1} parent=0 // pred_check_branch
    %13 = sbr.rel (0) target = $region9
  $region8: #{transhead_forward.1} parent=0 // pred_region
    _
  $region9: #{transhead_forward.1} parent=0 // pred_fallthru
    _
  // Predicated region
  $region10: #{transhead_forward.1} parent=0 // pred_check
    _
  $region11: #{transhead_forward.1} parent=0 // pred_check_branch
    %15 = sbr.rel (0) target = $region13
  $region12: #{transhead_forward.1} parent=0 // pred_region
    _
  $region13: #{transhead_forward.1} parent=0 // pred_fallthru
    _
  // Predicated region
  $region14: #{transhead_forward.1} parent=0 // pred_check
    _
  $region15: #{transhead_forward.1} parent=0 // pred_check_branch
    %17 = sbr.rel (0) target = $region17
  $region16: #{transhead_forward.1} parent=0 // pred_region
    _
  $region17: #{transhead_forward.1} parent=0 // pred_fallthru
    _
  // Predicated region
  $region18: #{transhead_forward.1} parent=0 // pred_check
    _
  $region19: #{transhead_forward.1} parent=0 // pred_check_branch
    %19 = sbr.rel (0) target = $region21
  $region20: #{transhead_forward.1} parent=0 // pred_region
    _
  $region21: #{transhead_forward.1} parent=0 // pred_fallthru
    _
  %v20 = vld [vmem:[%s0] sm:$0xff]
  %v21 = vld [vmem:[%s0 + $0x8] sm:$0xff]
  %v22 = vld [vmem:[%s0 + $0x10] sm:$0xf]
  %v23 = vld [vmem:[%s0 + $0x14] sm:$0xff]
  %v24 = vld [vmem:[%s0 + $0x1c] sm:$0xff]
  %v25 = vld [vmem:[%s0 + $0x24] sm:$0xf]
  %v26 = vld [vmem:[%s1] sm:$0xff]
  %v27 = vld [vmem:[%s1 + $0x8] sm:$0xff]
  %v28 = vld [vmem:[%s1 + $0x10] sm:$0xff]
  %v29 = vld [vmem:[%s1 + $0x18] sm:$0xff]
  %v30 = vld [vmem:[%s1 + $0x20] sm:$0xff]
  %v31 = vld [vmem:[%s1 + $0x28] sm:$0xff]
  %v32 = vld [vmem:[%s1 + $0x30] sm:$0xff]
  %v33 = vld [vmem:[%s1 + $0x38] sm:$0xff]
  %v34 = vld [vmem:[%s1 + $0x40] sm:$0xff]
  %v35 = vld [vmem:[%s1 + $0x48] sm:$0xff]
  %v36 = vld [vmem:[%s1 + $0x50] sm:$0xff]
  %v37 = vld [vmem:[%s1 + $0x58] sm:$0xff]
  %v38 = vld [vmem:[%s1 + $0x60] sm:$0xff]
  %v39 = vld [vmem:[%s1 + $0x68] sm:$0xff]
  %v40 = vld [vmem:[%s1 + $0x70] sm:$0xff]
  %v41 = vld [vmem:[%s1 + $0x78] sm:$0xff]
  %v42 = vld [vmem:[%s1 + $0x80] sm:$0xff]
  %v43 = vld [vmem:[%s1 + $0x88] sm:$0xff]
  %v44 = vld [vmem:[%s1 + $0x90] sm:$0xff]
  %v45 = vld [vmem:[%s1 + $0x98] sm:$0xff]
  %v46 = vld [vmem:[%s1 + $0xa0] sm:$0xff]
  %v47 = vld [vmem:[%s1 + $0xa8] sm:$0xff]
  %v48 = vld [vmem:[%s1 + $0xb0] sm:$0xff]
  %v49 = vld [vmem:[%s1 + $0xb8] sm:$0xff]
  %v50 = vld [vmem:[%s1 + $0xc0] sm:$0xff]
  %v51 = vld [vmem:[%s1 + $0xc8] sm:$0xff]
  %v52 = vld [vmem:[%s1 + $0xd0] sm:$0xff]
  %v53 = vld [vmem:[%s1 + $0xd8] sm:$0xff]
  %v54 = vld [vmem:[%s1 + $0xe0] sm:$0xff]
  %v55 = vld [vmem:[%s1 + $0xe8] sm:$0xff]
  %v56 = vld [vmem:[%s1 + $0xf0] sm:$0xff]
  %v57 = vld [vmem:[%s1 + $0xf8] sm:$0xff]
  %v58 = vld [vmem:[%s1 + $0x100] sm:$0xff]
  %v59 = vld [vmem:[%s1 + $0x108] sm:$0xff]
  %v60 = vld [vmem:[%s1 + $0x110] sm:$0xff]
  %v61 = vld [vmem:[%s1 + $0x118] sm:$0xff]
  %v62 = vld [vmem:[%s1 + $0x120] sm:$0xff]
  %v63 = vld [vmem:[%s1 + $0x128] sm:$0xff]
  %v64 = vld [vmem:[%s1 + $0x130] sm:$0xff]
  %v65 = vld [vmem:[%s1 + $0x138] sm:$0xff]
  %v66 = vld [vmem:[%s1 + $0x140] sm:$0xff]
  %v67 = vld [vmem:[%s1 + $0x148] sm:$0xff]
  %v68 = vld [vmem:[%s1 + $0x150] sm:$0xff]
  %v69 = vld [vmem:[%s1 + $0x158] sm:$0xff]
  %v70 = vld [vmem:[%s1 + $0x160] sm:$0xff]
  %v71 = vld [vmem:[%s1 + $0x168] sm:$0xff]
  %v72 = vld [vmem:[%s1 + $0x170] sm:$0xff]
  %v73 = vld [vmem:[%s1 + $0x178] sm:$0xff]
  %v74 = vld [vmem:[%s1 + $0x180] sm:$0xff]
  %v75 = vld [vmem:[%s1 + $0x188] sm:$0xff]
  %v76 = vld [vmem:[%s1 + $0x190] sm:$0xff]
  %v77 = vld [vmem:[%s1 + $0x198] sm:$0xff]
  %v78 = vld [vmem:[%s1 + $0x1a0] sm:$0xff]
  %v79 = vld [vmem:[%s1 + $0x1a8] sm:$0xff]
  %v80 = vld [vmem:[%s1 + $0x1b0] sm:$0xff]
  %v81 = vld [vmem:[%s1 + $0x1b8] sm:$0xff]
  %v82 = vld [vmem:[%s1 + $0x1c0] sm:$0xff]
  %v83 = vld [vmem:[%s1 + $0x1c8] sm:$0xff]
  %v84 = vld [vmem:[%s1 + $0x1d0] sm:$0xff]
  %v85 = vld [vmem:[%s1 + $0x1d8] sm:$0xff]
  %v86 = vld [vmem:[%s1 + $0x1e0] sm:$0xff]
  %v87 = vld [vmem:[%s1 + $0x1e8] sm:$0xff]
  %v88 = vld [vmem:[%s1 + $0x1f0] sm:$0xff]
  %v89 = vld [vmem:[%s1 + $0x1f8] sm:$0xff]
  %v90 = vld [vmem:[%s1 + $0x200] sm:$0xff]
  %v91 = vld [vmem:[%s1 + $0x208] sm:$0xff]
  %v92 = vld [vmem:[%s1 + $0x210] sm:$0xff]
  %v93 = vld [vmem:[%s1 + $0x218] sm:$0xff]
  %v94 = vld [vmem:[%s1 + $0x220] sm:$0xff]
  %v95 = vld [vmem:[%s1 + $0x228] sm:$0xff]
  %v96 = vld [vmem:[%s1 + $0x230] sm:$0xff]
  %v97 = vld [vmem:[%s1 + $0x238] sm:$0xff]
  %v98 = vld [vmem:[%s1 + $0x240] sm:$0xff]
  %v99 = vld [vmem:[%s1 + $0x248] sm:$0xff]
  %v100 = vld [vmem:[%s1 + $0x250] sm:$0xff]
  %v101 = vld [vmem:[%s1 + $0x258] sm:$0xff]
  %v102 = vld [vmem:[%s1 + $0x260] sm:$0xff]
  %v103 = vld [vmem:[%s1 + $0x268] sm:$0xff]
  %v104 = vld [vmem:[%s1 + $0x270] sm:$0xff]
  %v105 = vld [vmem:[%s1 + $0x278] sm:$0xff]
  %v106 = vld [vmem:[%s2] sm:$0x3]
  %v108 = vperm.slane %v106, 0
  %v109 = vperm.slane %v106, 1
  %v118 = vunpack.c.l.b16 %v20
  %v119 = vunpack.c.h.b16 %v20
  %v120 = vunpack.c.l.b16 %v21
  %v121 = vunpack.c.h.b16 %v21
  %v122 = vunpack.c.l.b16 %v22
  %v123 = vunpack.c.l.b16 %v23
  %v124 = vunpack.c.h.b16 %v23
  %v125 = vunpack.c.l.b16 %v24
  %v126 = vunpack.c.h.b16 %v24
  %v127 = vunpack.c.l.b16 %v25
  %v128 = vpack.c.b16 %v123, %v118
  %v129 = vpack.c.b16 %v124, %v119
  %v130 = vpack.c.b16 %v125, %v120
  %v131 = vpack.c.b16 %v126, %v121
  %v132 = vpack.c.b16 %v127, %v122
  %v218 = vunpack.c.l.b16 %v26
  %v219 = vunpack.c.h.b16 %v26
  %v220 = vunpack.c.l.b16 %v27
  %v221 = vunpack.c.h.b16 %v27
  %v222 = vunpack.c.l.b16 %v28
  %v223 = vunpack.c.h.b16 %v28
  %v224 = vunpack.c.l.b16 %v29
  %v225 = vunpack.c.h.b16 %v29
  %v226 = vunpack.c.l.b16 %v30
  %v227 = vunpack.c.h.b16 %v30
  %v228 = vunpack.c.l.b16 %v31
  %v229 = vunpack.c.h.b16 %v31
  %v230 = vunpack.c.l.b16 %v32
  %v231 = vunpack.c.h.b16 %v32
  %v232 = vunpack.c.l.b16 %v33
  %v233 = vunpack.c.h.b16 %v33
  %v234 = vunpack.c.l.b16 %v34
  %v235 = vunpack.c.h.b16 %v34
  %v236 = vunpack.c.l.b16 %v35
  %v237 = vunpack.c.h.b16 %v35
  %v238 = vunpack.c.l.b16 %v36
  %v239 = vunpack.c.h.b16 %v36
  %v240 = vunpack.c.l.b16 %v37
  %v241 = vunpack.c.h.b16 %v37
  %v242 = vunpack.c.l.b16 %v38
  %v243 = vunpack.c.h.b16 %v38
  %v244 = vunpack.c.l.b16 %v39
  %v245 = vunpack.c.h.b16 %v39
  %v246 = vunpack.c.l.b16 %v40
  %v247 = vunpack.c.h.b16 %v40
  %v248 = vunpack.c.l.b16 %v41
  %v249 = vunpack.c.h.b16 %v41
  %v250 = vunpack.c.l.b16 %v42
  %v251 = vunpack.c.h.b16 %v42
  %v252 = vunpack.c.l.b16 %v43
  %v253 = vunpack.c.h.b16 %v43
  %v254 = vunpack.c.l.b16 %v44
  %v255 = vunpack.c.h.b16 %v44
  %v256 = vunpack.c.l.b16 %v45
  %v257 = vunpack.c.h.b16 %v45
  %v258 = vunpack.c.l.b16 %v46
  %v259 = vunpack.c.h.b16 %v46
  %v260 = vunpack.c.l.b16 %v47
  %v261 = vunpack.c.h.b16 %v47
  %v262 = vunpack.c.l.b16 %v48
  %v263 = vunpack.c.h.b16 %v48
  %v264 = vunpack.c.l.b16 %v49
  %v265 = vunpack.c.h.b16 %v49
  %v266 = vunpack.c.l.b16 %v50
  %v267 = vunpack.c.h.b16 %v50
  %v268 = vunpack.c.l.b16 %v51
  %v269 = vunpack.c.h.b16 %v51
  %v270 = vunpack.c.l.b16 %v52
  %v271 = vunpack.c.h.b16 %v52
  %v272 = vunpack.c.l.b16 %v53
  %v273 = vunpack.c.h.b16 %v53
  %v274 = vunpack.c.l.b16 %v54
  %v275 = vunpack.c.h.b16 %v54
  %v276 = vunpack.c.l.b16 %v55
  %v277 = vunpack.c.h.b16 %v55
  %v278 = vunpack.c.l.b16 %v56
  %v279 = vunpack.c.h.b16 %v56
  %v280 = vunpack.c.l.b16 %v57
  %v281 = vunpack.c.h.b16 %v57
  %v282 = vunpack.c.l.b16 %v58
  %v283 = vunpack.c.h.b16 %v58
  %v284 = vunpack.c.l.b16 %v59
  %v285 = vunpack.c.h.b16 %v59
  %v286 = vunpack.c.l.b16 %v60
  %v287 = vunpack.c.h.b16 %v60
  %v288 = vunpack.c.l.b16 %v61
  %v289 = vunpack.c.h.b16 %v61
  %v290 = vunpack.c.l.b16 %v62
  %v291 = vunpack.c.h.b16 %v62
  %v292 = vunpack.c.l.b16 %v63
  %v293 = vunpack.c.h.b16 %v63
  %v294 = vunpack.c.l.b16 %v64
  %v295 = vunpack.c.h.b16 %v64
  %v296 = vunpack.c.l.b16 %v65
  %v297 = vunpack.c.h.b16 %v65
  %v298 = vunpack.c.l.b16 %v66
  %v299 = vunpack.c.h.b16 %v66
  %v300 = vunpack.c.l.b16 %v67
  %v301 = vunpack.c.h.b16 %v67
  %v302 = vunpack.c.l.b16 %v68
  %v303 = vunpack.c.h.b16 %v68
  %v304 = vunpack.c.l.b16 %v69
  %v305 = vunpack.c.h.b16 %v69
  %v306 = vunpack.c.l.b16 %v70
  %v307 = vunpack.c.h.b16 %v70
  %v308 = vunpack.c.l.b16 %v71
  %v309 = vunpack.c.h.b16 %v71
  %v310 = vunpack.c.l.b16 %v72
  %v311 = vunpack.c.h.b16 %v72
  %v312 = vunpack.c.l.b16 %v73
  %v313 = vunpack.c.h.b16 %v73
  %v314 = vunpack.c.l.b16 %v74
  %v315 = vunpack.c.h.b16 %v74
  %v316 = vunpack.c.l.b16 %v75
  %v317 = vunpack.c.h.b16 %v75
  %v318 = vunpack.c.l.b16 %v76
  %v319 = vunpack.c.h.b16 %v76
  %v320 = vunpack.c.l.b16 %v77
  %v321 = vunpack.c.h.b16 %v77
  %v322 = vunpack.c.l.b16 %v78
  %v323 = vunpack.c.h.b16 %v78
  %v324 = vunpack.c.l.b16 %v79
  %v325 = vunpack.c.h.b16 %v79
  %v326 = vunpack.c.l.b16 %v80
  %v327 = vunpack.c.h.b16 %v80
  %v328 = vunpack.c.l.b16 %v81
  %v329 = vunpack.c.h.b16 %v81
  %v330 = vunpack.c.l.b16 %v82
  %v331 = vunpack.c.h.b16 %v82
  %v332 = vunpack.c.l.b16 %v83
  %v333 = vunpack.c.h.b16 %v83
  %v334 = vunpack.c.l.b16 %v84
  %v335 = vunpack.c.h.b16 %v84
  %v336 = vunpack.c.l.b16 %v85
  %v337 = vunpack.c.h.b16 %v85
  %v338 = vunpack.c.l.b16 %v86
  %v339 = vunpack.c.h.b16 %v86
  %v340 = vunpack.c.l.b16 %v87
  %v341 = vunpack.c.h.b16 %v87
  %v342 = vunpack.c.l.b16 %v88
  %v343 = vunpack.c.h.b16 %v88
  %v344 = vunpack.c.l.b16 %v89
  %v345 = vunpack.c.h.b16 %v89
  %v346 = vunpack.c.l.b16 %v90
  %v347 = vunpack.c.h.b16 %v90
  %v348 = vunpack.c.l.b16 %v91
  %v349 = vunpack.c.h.b16 %v91
  %v350 = vunpack.c.l.b16 %v92
  %v351 = vunpack.c.h.b16 %v92
  %v352 = vunpack.c.l.b16 %v93
  %v353 = vunpack.c.h.b16 %v93
  %v354 = vunpack.c.l.b16 %v94
  %v355 = vunpack.c.h.b16 %v94
  %v356 = vunpack.c.l.b16 %v95
  %v357 = vunpack.c.h.b16 %v95
  %v358 = vunpack.c.l.b16 %v96
  %v359 = vunpack.c.h.b16 %v96
  %v360 = vunpack.c.l.b16 %v97
  %v361 = vunpack.c.h.b16 %v97
  %v362 = vunpack.c.l.b16 %v98
  %v363 = vunpack.c.h.b16 %v98
  %v364 = vunpack.c.l.b16 %v99
  %v365 = vunpack.c.h.b16 %v99
  %v366 = vunpack.c.l.b16 %v100
  %v367 = vunpack.c.h.b16 %v100
  %v368 = vunpack.c.l.b16 %v101
  %v369 = vunpack.c.h.b16 %v101
  %v370 = vunpack.c.l.b16 %v102
  %v371 = vunpack.c.h.b16 %v102
  %v372 = vunpack.c.l.b16 %v103
  %v373 = vunpack.c.h.b16 %v103
  %v374 = vunpack.c.l.b16 %v104
  %v375 = vunpack.c.h.b16 %v104
  %v376 = vunpack.c.l.b16 %v105
  %v377 = vunpack.c.h.b16 %v105
  %v378 = vpack.c.b16 %v220, %v218
  %v379 = vpack.c.b16 %v221, %v219
  %v380 = vpack.c.b16 %v224, %v222
  %v381 = vpack.c.b16 %v225, %v223
  %v382 = vpack.c.b16 %v228, %v226
  %v383 = vpack.c.b16 %v229, %v227
  %v384 = vpack.c.b16 %v232, %v230
  %v385 = vpack.c.b16 %v233, %v231
  %v386 = vpack.c.b16 %v236, %v234
  %v387 = vpack.c.b16 %v237, %v235
  %v388 = vpack.c.b16 %v240, %v238
  %v389 = vpack.c.b16 %v241, %v239
  %v390 = vpack.c.b16 %v244, %v242
  %v391 = vpack.c.b16 %v245, %v243
  %v392 = vpack.c.b16 %v248, %v246
  %v393 = vpack.c.b16 %v249, %v247
  %v394 = vpack.c.b16 %v252, %v250
  %v395 = vpack.c.b16 %v253, %v251
  %v396 = vpack.c.b16 %v256, %v254
  %v397 = vpack.c.b16 %v257, %v255
  %v398 = vpack.c.b16 %v260, %v258
  %v399 = vpack.c.b16 %v261, %v259
  %v400 = vpack.c.b16 %v264, %v262
  %v401 = vpack.c.b16 %v265, %v263
  %v402 = vpack.c.b16 %v268, %v266
  %v403 = vpack.c.b16 %v269, %v267
  %v404 = vpack.c.b16 %v272, %v270
  %v405 = vpack.c.b16 %v273, %v271
  %v406 = vpack.c.b16 %v276, %v274
  %v407 = vpack.c.b16 %v277, %v275
  %v408 = vpack.c.b16 %v280, %v278
  %v409 = vpack.c.b16 %v281, %v279
  %v410 = vpack.c.b16 %v284, %v282
  %v411 = vpack.c.b16 %v285, %v283
  %v412 = vpack.c.b16 %v288, %v286
  %v413 = vpack.c.b16 %v289, %v287
  %v414 = vpack.c.b16 %v292, %v290
  %v415 = vpack.c.b16 %v293, %v291
  %v416 = vpack.c.b16 %v296, %v294
  %v417 = vpack.c.b16 %v297, %v295
  %v418 = vpack.c.b16 %v300, %v298
  %v419 = vpack.c.b16 %v301, %v299
  %v420 = vpack.c.b16 %v304, %v302
  %v421 = vpack.c.b16 %v305, %v303
  %v422 = vpack.c.b16 %v308, %v306
  %v423 = vpack.c.b16 %v309, %v307
  %v424 = vpack.c.b16 %v312, %v310
  %v425 = vpack.c.b16 %v313, %v311
  %v426 = vpack.c.b16 %v316, %v314
  %v427 = vpack.c.b16 %v317, %v315
  %v428 = vpack.c.b16 %v320, %v318
  %v429 = vpack.c.b16 %v321, %v319
  %v430 = vpack.c.b16 %v324, %v322
  %v431 = vpack.c.b16 %v325, %v323
  %v432 = vpack.c.b16 %v328, %v326
  %v433 = vpack.c.b16 %v329, %v327
  %v434 = vpack.c.b16 %v332, %v330
  %v435 = vpack.c.b16 %v333, %v331
  %v436 = vpack.c.b16 %v336, %v334
  %v437 = vpack.c.b16 %v337, %v335
  %v438 = vpack.c.b16 %v340, %v338
  %v439 = vpack.c.b16 %v341, %v339
  %v440 = vpack.c.b16 %v344, %v342
  %v441 = vpack.c.b16 %v345, %v343
  %v442 = vpack.c.b16 %v348, %v346
  %v443 = vpack.c.b16 %v349, %v347
  %v444 = vpack.c.b16 %v352, %v350
  %v445 = vpack.c.b16 %v353, %v351
  %v446 = vpack.c.b16 %v356, %v354
  %v447 = vpack.c.b16 %v357, %v355
  %v448 = vpack.c.b16 %v360, %v358
  %v449 = vpack.c.b16 %v361, %v359
  %v450 = vpack.c.b16 %v364, %v362
  %v451 = vpack.c.b16 %v365, %v363
  %v452 = vpack.c.b16 %v368, %v366
  %v453 = vpack.c.b16 %v369, %v367
  %v454 = vpack.c.b16 %v372, %v370
  %v455 = vpack.c.b16 %v373, %v371
  %v456 = vpack.c.b16 %v376, %v374
  %v457 = vpack.c.b16 %v377, %v375
  %538 = vmatpush.bf16.msra.mxu0 %v392
  %539 = vmatpush.bf16.msra.mxu0 %v390
  %540 = vmatpush.bf16.msra.mxu0 %v388
  %541 = vmatpush.bf16.msra.mxu0 %v386
  %542 = vmatpush.bf16.msra.mxu0 %v384
  %543 = vmatpush.bf16.msra.mxu0 %v382
  %544 = vmatpush.bf16.msra.mxu0 %v380
  %545 = vmatpush.bf16.msra.mxu0 %v378
  %546 = vmatmul.bf16.gmra.mxu0 %v128
  %v547 = vpop.f32.mrf.mxu0
  %v548 = vadd.f32 %v108, %v547
  %v549 = vpop.f32.mrf.mxu0
  %v550 = vadd.f32 %v108, %v549
  %551 = vdwg.mxu0
  %552 = vmatpush.bf16.msra.mxu0 %v408
  %553 = vmatpush.bf16.msra.mxu0 %v406
  %554 = vmatpush.bf16.msra.mxu0 %v404
  %555 = vmatpush.bf16.msra.mxu0 %v402
  %556 = vmatpush.bf16.msra.mxu0 %v400
  %557 = vmatpush.bf16.msra.mxu0 %v398
  %558 = vmatpush.bf16.msra.mxu0 %v396
  %559 = vmatpush.bf16.msra.mxu0 %v394
  %560 = vmatmul.bf16.gmra.mxu0 %v129
  %v561 = vpop.f32.mrf.mxu0
  %v562 = vadd.f32 %v548, %v561
  %v563 = vpop.f32.mrf.mxu0
  %v564 = vadd.f32 %v550, %v563
  %565 = vdwg.mxu0
  %566 = vmatpush.bf16.msra.mxu0 %v424
  %567 = vmatpush.bf16.msra.mxu0 %v422
  %568 = vmatpush.bf16.msra.mxu0 %v420
  %569 = vmatpush.bf16.msra.mxu0 %v418
  %570 = vmatpush.bf16.msra.mxu0 %v416
  %571 = vmatpush.bf16.msra.mxu0 %v414
  %572 = vmatpush.bf16.msra.mxu0 %v412
  %573 = vmatpush.bf16.msra.mxu0 %v410
  %574 = vmatmul.bf16.gmra.mxu0 %v130
  %v575 = vpop.f32.mrf.mxu0
  %v576 = vadd.f32 %v562, %v575
  %v577 = vpop.f32.mrf.mxu0
  %v578 = vadd.f32 %v564, %v577
  %579 = vdwg.mxu0
  %580 = vmatpush.bf16.msra.mxu0 %v440
  %581 = vmatpush.bf16.msra.mxu0 %v438
  %582 = vmatpush.bf16.msra.mxu0 %v436
  %583 = vmatpush.bf16.msra.mxu0 %v434
  %584 = vmatpush.bf16.msra.mxu0 %v432
  %585 = vmatpush.bf16.msra.mxu0 %v430
  %586 = vmatpush.bf16.msra.mxu0 %v428
  %587 = vmatpush.bf16.msra.mxu0 %v426
  %588 = vmatmul.bf16.gmra.mxu0 %v131
  %v589 = vpop.f32.mrf.mxu0
  %v590 = vadd.f32 %v576, %v589
  %v591 = vpop.f32.mrf.mxu0
  %v592 = vadd.f32 %v578, %v591
  %593 = vdwg.mxu0
  %594 = vmatpush.bf16.msra.mxu0 %v456
  %595 = vmatpush.bf16.msra.mxu0 %v454
  %596 = vmatpush.bf16.msra.mxu0 %v452
  %597 = vmatpush.bf16.msra.mxu0 %v450
  %598 = vmatpush.bf16.msra.mxu0 %v448
  %599 = vmatpush.bf16.msra.mxu0 %v446
  %600 = vmatpush.bf16.msra.mxu0 %v444
  %601 = vmatpush.bf16.msra.mxu0 %v442
  %602 = vmatmul.bf16.gmra.mxu0 %v132
  %v603 = vpop.f32.mrf.mxu0
  %v604 = vadd.f32 %v590, %v603
  %v605 = vpop.f32.mrf.mxu0
  %v606 = vadd.f32 %v592, %v605
  %607 = vdwg.mxu0
  %608 = vmatpush.bf16.msra.mxu0 %v393
  %609 = vmatpush.bf16.msra.mxu0 %v391
  %610 = vmatpush.bf16.msra.mxu0 %v389
  %611 = vmatpush.bf16.msra.mxu0 %v387
  %612 = vmatpush.bf16.msra.mxu0 %v385
  %613 = vmatpush.bf16.msra.mxu0 %v383
  %614 = vmatpush.bf16.msra.mxu0 %v381
  %615 = vmatpush.bf16.msra.mxu0 %v379
  %616 = vmatmul.bf16.gmra.mxu0 %v128
  %v617 = vpop.f32.mrf.mxu0
  %v618 = vadd.f32 %v109, %v617
  %v619 = vpop.f32.mrf.mxu0
  %v620 = vadd.f32 %v109, %v619
  %621 = vdwg.mxu0
  %622 = vmatpush.bf16.msra.mxu0 %v409
  %623 = vmatpush.bf16.msra.mxu0 %v407
  %624 = vmatpush.bf16.msra.mxu0 %v405
  %625 = vmatpush.bf16.msra.mxu0 %v403
  %626 = vmatpush.bf16.msra.mxu0 %v401
  %627 = vmatpush.bf16.msra.mxu0 %v399
  %628 = vmatpush.bf16.msra.mxu0 %v397
  %629 = vmatpush.bf16.msra.mxu0 %v395
  %630 = vmatmul.bf16.gmra.mxu0 %v129
  %v631 = vpop.f32.mrf.mxu0
  %v632 = vadd.f32 %v618, %v631
  %v633 = vpop.f32.mrf.mxu0
  %v634 = vadd.f32 %v620, %v633
  %635 = vdwg.mxu0
  %636 = vmatpush.bf16.msra.mxu0 %v425
  %637 = vmatpush.bf16.msra.mxu0 %v423
  %638 = vmatpush.bf16.msra.mxu0 %v421
  %639 = vmatpush.bf16.msra.mxu0 %v419
  %640 = vmatpush.bf16.msra.mxu0 %v417
  %641 = vmatpush.bf16.msra.mxu0 %v415
  %642 = vmatpush.bf16.msra.mxu0 %v413
  %643 = vmatpush.bf16.msra.mxu0 %v411
  %644 = vmatmul.bf16.gmra.mxu0 %v130
  %v645 = vpop.f32.mrf.mxu0
  %v646 = vadd.f32 %v632, %v645
  %v647 = vpop.f32.mrf.mxu0
  %v648 = vadd.f32 %v634, %v647
  %649 = vdwg.mxu0
  %650 = vmatpush.bf16.msra.mxu0 %v441
  %651 = vmatpush.bf16.msra.mxu0 %v439
  %652 = vmatpush.bf16.msra.mxu0 %v437
  %653 = vmatpush.bf16.msra.mxu0 %v435
  %654 = vmatpush.bf16.msra.mxu0 %v433
  %655 = vmatpush.bf16.msra.mxu0 %v431
  %656 = vmatpush.bf16.msra.mxu0 %v429
  %657 = vmatpush.bf16.msra.mxu0 %v427
  %658 = vmatmul.bf16.gmra.mxu0 %v131
  %v659 = vpop.f32.mrf.mxu0
  %v660 = vadd.f32 %v646, %v659
  %v661 = vpop.f32.mrf.mxu0
  %v662 = vadd.f32 %v648, %v661
  %663 = vdwg.mxu0
  %664 = vmatpush.bf16.msra.mxu0 %v457
  %665 = vmatpush.bf16.msra.mxu0 %v455
  %666 = vmatpush.bf16.msra.mxu0 %v453
  %667 = vmatpush.bf16.msra.mxu0 %v451
  %668 = vmatpush.bf16.msra.mxu0 %v449
  %669 = vmatpush.bf16.msra.mxu0 %v447
  %670 = vmatpush.bf16.msra.mxu0 %v445
  %671 = vmatpush.bf16.msra.mxu0 %v443
  %672 = vmatmul.bf16.gmra.mxu0 %v132
  %v673 = vpop.f32.mrf.mxu0
  %v674 = vadd.f32 %v660, %v673
  %v675 = vpop.f32.mrf.mxu0
  %v676 = vadd.f32 %v662, %v675
  %677 = vdwg.mxu0
  %v678 = vmax.f32 %v604, 0.0
  %v679 = vmax.f32 %v674, 0.0
  %v680 = vmax.f32 %v606, 0.0
  %v681 = vmax.f32 %v676, 0.0
  %v682 = vpack.c.bf16 %v680, %v678
  %v683 = vpack.c.bf16 %v681, %v679
  %v684 = vld [vmem:[%s3] sm:$0xf]
  %v685 = vld [vmem:[%s3 + $0x4] sm:$0xf]
  %v686 = vld [vmem:[%s3 + $0x8] sm:$0xf]
  %v687 = vld [vmem:[%s3 + $0xc] sm:$0xf]
  %v688 = vld [vmem:[%s3 + $0x10] sm:$0xf]
  %v689 = vld [vmem:[%s3 + $0x14] sm:$0xf]
  %v690 = vld [vmem:[%s3 + $0x18] sm:$0xf]
  %v691 = vld [vmem:[%s3 + $0x1c] sm:$0xf]
  %v692 = vld [vmem:[%s3 + $0x20] sm:$0xf]
  %v693 = vld [vmem:[%s3 + $0x24] sm:$0xf]
  %v694 = vld [vmem:[%s3 + $0x28] sm:$0xf]
  %v695 = vld [vmem:[%s3 + $0x2c] sm:$0xf]
  %v696 = vld [vmem:[%s3 + $0x30] sm:$0xf]
  %v697 = vld [vmem:[%s3 + $0x34] sm:$0xf]
  %v698 = vld [vmem:[%s3 + $0x38] sm:$0xf]
  %v699 = vld [vmem:[%s3 + $0x3c] sm:$0xf]
  %v700 = vld [vmem:[%s3 + $0x40] sm:$0xf]
  %v701 = vld [vmem:[%s3 + $0x44] sm:$0xf]
  %v702 = vld [vmem:[%s3 + $0x48] sm:$0xf]
  %v703 = vld [vmem:[%s3 + $0x4c] sm:$0xf]
  %v704 = vld [vmem:[%s3 + $0x50] sm:$0xf]
  %v705 = vld [vmem:[%s3 + $0x54] sm:$0xf]
  %v706 = vld [vmem:[%s3 + $0x58] sm:$0xf]
  %v707 = vld [vmem:[%s3 + $0x5c] sm:$0xf]
  %v708 = vld [vmem:[%s3 + $0x60] sm:$0xf]
  %v709 = vld [vmem:[%s3 + $0x64] sm:$0xf]
  %v710 = vld [vmem:[%s3 + $0x68] sm:$0xf]
  %v711 = vld [vmem:[%s3 + $0x6c] sm:$0xf]
  %v712 = vld [vmem:[%s3 + $0x70] sm:$0xf]
  %v713 = vld [vmem:[%s3 + $0x74] sm:$0xf]
  %v714 = vld [vmem:[%s3 + $0x78] sm:$0xf]
  %v715 = vld [vmem:[%s3 + $0x7c] sm:$0xf]
  %v716 = vld [vmem:[%s4] sm:$0x1]
  %v718 = vperm.slane %v716, 0
  %v752 = vunpack.c.l.b16 %v684
  %v753 = vunpack.c.l.b16 %v685
  %v754 = vunpack.c.l.b16 %v686
  %v755 = vunpack.c.l.b16 %v687
  %v756 = vunpack.c.l.b16 %v688
  %v757 = vunpack.c.l.b16 %v689
  %v758 = vunpack.c.l.b16 %v690
  %v759 = vunpack.c.l.b16 %v691
  %v760 = vunpack.c.l.b16 %v692
  %v761 = vunpack.c.l.b16 %v693
  %v762 = vunpack.c.l.b16 %v694
  %v763 = vunpack.c.l.b16 %v695
  %v764 = vunpack.c.l.b16 %v696
  %v765 = vunpack.c.l.b16 %v697
  %v766 = vunpack.c.l.b16 %v698
  %v767 = vunpack.c.l.b16 %v699
  %v768 = vunpack.c.l.b16 %v700
  %v769 = vunpack.c.l.b16 %v701
  %v770 = vunpack.c.l.b16 %v702
  %v771 = vunpack.c.l.b16 %v703
  %v772 = vunpack.c.l.b16 %v704
  %v773 = vunpack.c.l.b16 %v705
  %v774 = vunpack.c.l.b16 %v706
  %v775 = vunpack.c.l.b16 %v707
  %v776 = vunpack.c.l.b16 %v708
  %v777 = vunpack.c.l.b16 %v709
  %v778 = vunpack.c.l.b16 %v710
  %v779 = vunpack.c.l.b16 %v711
  %v780 = vunpack.c.l.b16 %v712
  %v781 = vunpack.c.l.b16 %v713
  %v782 = vunpack.c.l.b16 %v714
  %v783 = vunpack.c.l.b16 %v715
  %v784 = vpack.c.b16 %v753, %v752
  %v785 = vpack.c.b16 %v755, %v754
  %v786 = vpack.c.b16 %v757, %v756
  %v787 = vpack.c.b16 %v759, %v758
  %v788 = vpack.c.b16 %v761, %v760
  %v789 = vpack.c.b16 %v763, %v762
  %v790 = vpack.c.b16 %v765, %v764
  %v791 = vpack.c.b16 %v767, %v766
  %v792 = vpack.c.b16 %v769, %v768
  %v793 = vpack.c.b16 %v771, %v770
  %v794 = vpack.c.b16 %v773, %v772
  %v795 = vpack.c.b16 %v775, %v774
  %v796 = vpack.c.b16 %v777, %v776
  %v797 = vpack.c.b16 %v779, %v778
  %v798 = vpack.c.b16 %v781, %v780
  %v799 = vpack.c.b16 %v783, %v782
  %816 = vmatpush.bf16.msra.mxu0 %v791
  %817 = vmatpush.bf16.msra.mxu0 %v790
  %818 = vmatpush.bf16.msra.mxu0 %v789
  %819 = vmatpush.bf16.msra.mxu0 %v788
  %820 = vmatpush.bf16.msra.mxu0 %v787
  %821 = vmatpush.bf16.msra.mxu0 %v786
  %822 = vmatpush.bf16.msra.mxu0 %v785
  %823 = vmatpush.bf16.msra.mxu0 %v784
  %824 = vmatmul.bf16.gmra.mxu0 %v682
  %v825 = vpop.f32.mrf.mxu0
  %v826 = vadd.f32 %v718, %v825
  %v827 = vpop.f32.mrf.mxu0
  %v828 = vadd.f32 %v718, %v827
  %829 = vdwg.mxu0
  %830 = vmatpush.bf16.msra.mxu0 %v799
  %831 = vmatpush.bf16.msra.mxu0 %v798
  %832 = vmatpush.bf16.msra.mxu0 %v797
  %833 = vmatpush.bf16.msra.mxu0 %v796
  %834 = vmatpush.bf16.msra.mxu0 %v795
  %835 = vmatpush.bf16.msra.mxu0 %v794
  %836 = vmatpush.bf16.msra.mxu0 %v793
  %837 = vmatpush.bf16.msra.mxu0 %v792
  %838 = vmatmul.bf16.gmra.mxu0 %v683
  %v839 = vpop.f32.mrf.mxu0
  %v840 = vadd.f32 %v826, %v839
  %v841 = vpop.f32.mrf.mxu0
  %v842 = vadd.f32 %v828, %v841
  %843 = vdwg.mxu0
  %844 = vst [vmem:[%s5] sm:$0xff] %v840
  %845 = vst [vmem:[%s5 + $0x8] sm:$0xff] %v842
  // Predicated region
  $region22: #{transhead_forward.1} parent=0 // pred_check
    _
  $region23: #{transhead_forward.1} parent=0 // pred_check_branch
    %847 = sbr.rel (0) target = $region25
  $region24: #{transhead_forward.1} parent=0 // pred_region
    _
  $region25: #{transhead_forward.1} parent=0 // pred_fallthru
    _
  // Predicated region
  $region26: #{transhead_forward.1} parent=0 // pred_check
    _
  $region27: #{transhead_forward.1} parent=0 // pred_check_branch
    %849 = sbr.rel (0) target = $region29
  $region28: #{transhead_forward.1} parent=0 // pred_region
    _
  $region29: #{transhead_forward.1} parent=0 // pred_fallthru
    _

</llo_original>
